<compile_context>
chip_gen: v7x
topology: tpu7x:2x2x1
jax: 0.10.0
libtpu: 0.0.40
codegen_flags: <defaults>
</compile_context>

<pallas_src>
import jax
import jax.numpy as jnp
import numpy as np
from jax.experimental import pallas as pl
from jax.experimental.pallas import tpu as pltpu


# ----------------------------- Pallas kernel ------------------------------ #
def _argmax_kernel(logits_ref, pred_ref):
    # logits_ref block: (tT, C) in the caller's native dtype (f32 or bf16).
    # Compute entirely in native dtype: max / compare on bf16 is exact for
    # argmax semantics, rides the bf16 VPU path on v6e/v7x, and on v5e the
    # compiler inserts the f32 widening itself.
    x = logits_ref[...]                                   # (tT, C)
    num_classes = x.shape[-1]

    # Lane-axis reduce in natural layout (no full-block transpose).
    m = jnp.max(x, axis=-1, keepdims=True)                # (tT, 1) per-row max
    cls = jax.lax.broadcasted_iota(jnp.int32, x.shape, dimension=1)
    # Non-max entries -> sentinel C; min over ties -> first occurrence,
    # matching torch.argmax / jnp.argmax tie-breaking.
    # NOTE: if a row's max is NaN, `x >= m` is false everywhere and the sentinel
    # (out-of-range class id) is emitted instead of the NaN position; harmless
    # for finite logits.
    cand = jnp.where(x >= m, cls, num_classes)            # (tT, C) int32
    pred_ref[...] = jnp.min(cand, axis=-1, keepdims=True).astype(jnp.int32)  # (tT, 1)


# --------------------------- tiling / budgets ------------------------------ #
def _round_up_8(x):
    return max(8, ((int(x) + 7) // 8) * 8)


def _device_budgets():
    """(per-step input-block byte budget, scoped vmem_limit_bytes) per TPU gen.

    In-kernel working set is roughly (2*itemsize + 8) bytes per block element
    (double-buffered input plus int32 iota/candidate temporaries), so an 8 MiB
    f32 block is ~32 MiB resident: comfortable under a 64 MiB scoped limit on
    128 MiB v5e/v6e.  On v7x (64 MiB physical VMEM, ~2x per-TC HBM bandwidth)
    cap the block at ~4 MiB and the scoped limit at 40 MiB.
    """
    try:
        vmem_cap = int(pltpu.get_tpu_info().vmem_capacity_bytes)
    except Exception:
        vmem_cap = 64 * 1024 * 1024          # unknown -> assume smallest (v7x-like)
    if vmem_cap >= 96 * 1024 * 1024:         # v5e / v6e class (128 MiB VMEM)
        return 8 * 1024 * 1024, 64 * 1024 * 1024
    return 4 * 1024 * 1024, 40 * 1024 * 1024  # v7x class (64 MiB VMEM)


def _row_tile(N, C, itemsize, block_budget_bytes):
    """Rows (folded B*T) per block.

    Multiple of 8 (sublane-aligned blocks) or the full row count.  Floor is 8
    rows, so very large C stays within the scoped VMEM limit instead of the old
    128-row floor blowing it up.
    """
    row_bytes = max(itemsize * C, 1)
    rows = max(8, (block_budget_bytes // row_bytes) // 8 * 8)
    # Keep >= ~8 grid steps for DMA pipelining / both v7x TensorCores when the
    # data is large, but never shrink a block below ~1 MiB just to add steps.
    min_dma_rows = max(8, ((1 << 20) // row_bytes) // 8 * 8)
    rows = min(rows, max(min_dma_rows, _round_up_8(pl.cdiv(N, 8))))
    if rows >= N:
        return N
    return rows
    # TODO(synk): for C so large that even an 8-row block overflows VMEM
    # (~>1M classes in f32), add a C-tiled reduction grid axis carrying running
    # (max, argmin) scratch with pl.when init/finalize.


def argmax_classes(logits, row_tile=None):
    """predicted_ids = argmax(logits, axis=-1) as int32, computed on TPU.

    Args:
      logits: (B, T, C) float array (any float dtype; computed in native dtype).
      row_tile: optional row-tile override (testing only).
    Returns:
      (B, T) int32 argmax over the class dimension (first-occurrence tie-break).
    """
    B, T, C = logits.shape
    N = B * T
    x2d = logits.reshape(N, C)                 # free metadata reshape (contiguous input)
    itemsize = jnp.dtype(logits.dtype).itemsize
    block_budget, vmem_limit = _device_budgets()
    tT = min(int(row_tile), N) if row_tile is not None else _row_tile(
        N, C, itemsize, block_budget)
    grid = (pl.cdiv(N, tT),)

    pred = pl.pallas_call(
        _argmax_kernel,
        grid=grid,
        in_specs=[pl.BlockSpec((tT, C), lambda i: (i, 0))],
        out_specs=pl.BlockSpec((tT, 1), lambda i: (i, 0)),
        out_shape=jax.ShapeDtypeStruct((N, 1), jnp.int32),
        compiler_params=pltpu.CompilerParams(
            dimension_semantics=("parallel",),
            vmem_limit_bytes=vmem_limit,
        ),
    )(x2d)
    return pred.reshape(B, T)


# ----------------------------- host-side glue ------------------------------ #
def build_target(batch, padding_idx):
    """Pads per-item 'phone' sequences and returns (padded_targets, target_lengths)."""
    seqs = [np.asarray(item["phone"]).reshape(-1) for item in batch]
    target_lengths = np.array([s.shape[0] for s in seqs], dtype=np.int64)
    max_len = max(int(l) for l in target_lengths)
    padded = np.full((len(seqs), max_len), padding_idx, dtype=np.int64)
    for i, s in enumerate(seqs):
        padded[i, : s.shape[0]] = s
    return padded, target_lengths


def edit_distance(seq1, seq2):
    m, n = len(seq1), len(seq2)
    dp = [[0] * (n + 1) for _ in range(m + 1)]
    for i in range(m + 1):
        dp[i][0] = i
    for j in range(n + 1):
        dp[0][j] = j
    for i in range(1, m + 1):
        for j in range(1, n + 1):
            cost = 0 if seq1[i - 1] == seq2[j - 1] else 1
            dp[i][j] = min(dp[i - 1][j] + 1, dp[i][j - 1] + 1, dp[i - 1][j - 1] + cost)
    return dp[m][n]


class PERModule:
    def __init__(self, input_key, target_key, blank_idx=0, padding_idx=None):
        self.input_key = input_key
        self.target_key = target_key
        self.blank_idx = blank_idx
        self.padding_idx = padding_idx if padding_idx is not None else blank_idx + 1

    def decode_predictions(self, predicted_ids):
        out = []
        prev = None
        for tid in predicted_ids:
            tid = int(tid)
            if tid != self.blank_idx and tid != prev:
                out.append(tid)
            prev = tid
        return out

    def forward(self, info):
        padded_targets, target_lengths = build_target(
            info[self.target_key], self.padding_idx
        )
        logits = jnp.asarray(info[self.input_key])            # (B, T, C), native dtype

        # NOTE: the reference also computes log_softmax(logits).permute(1,0,2), but
        # that tensor never contributes to the returned PER, so it is dropped from
        # the device hot path (argmax-only kernel).
        predicted_ids = argmax_classes(logits)
        predicted_ids = np.asarray(jax.block_until_ready(predicted_ids))

        pers = []
        batch_size = predicted_ids.shape[0]
        for i in range(batch_size):
            pred_sequence = self.decode_predictions(predicted_ids[i])
            tl = int(target_lengths[i])
            target_sequence = [
                int(t) for t in padded_targets[i, :tl] if int(t) != self.padding_idx
            ]
            # TODO(synk): the edit-distance DP is a data-dependent sequential recurrence
            # over variable-length decoded sequences; kept on host (no clean Pallas form).
            distance = edit_distance(pred_sequence, target_sequence)
            pers.append(distance / max(len(target_sequence), 1))
        return sum(pers) / len(pers)


# --------------------------------- main ------------------------------------ #
if __name__ == "__main__":
    key = jax.random.PRNGKey(0)
    B, T, C = 2, 8, 32

    k_logits, k_p0, k_p1, k_misc = jax.random.split(key, 4)
    logits = jax.random.normal(k_logits, (B, T, C), dtype=jnp.float32)

    # Sanity check 1: small aligned case against the pure-JAX reference.
    pred_k = jax.block_until_ready(argmax_classes(logits))
    pred_ref = jnp.argmax(logits, axis=-1).astype(jnp.int32)
    np.testing.assert_array_equal(np.asarray(pred_k), np.asarray(pred_ref))

    # Sanity check 2: C not a multiple of 128 and a row tile that does not divide
    # B*T (exercises lane padding in the reduce and masked edge-block writes).
    logits2 = jax.random.normal(k_misc, (2, 37, 45), dtype=jnp.float32)
    pred_k2 = jax.block_until_ready(argmax_classes(logits2, row_tile=32))
    pred_ref2 = jnp.argmax(logits2, axis=-1).astype(jnp.int32)
    np.testing.assert_array_equal(np.asarray(pred_k2), np.asarray(pred_ref2))

    # Sanity check 3: bf16 input computed in native dtype.
    logits_bf16 = logits.astype(jnp.bfloat16)
    pred_k3 = jax.block_until_ready(argmax_classes(logits_bf16))
    pred_ref3 = jnp.argmax(logits_bf16, axis=-1).astype(jnp.int32)
    np.testing.assert_array_equal(np.asarray(pred_k3), np.asarray(pred_ref3))

    # Synthetic target batch: list of dicts with variable-length 'phone' sequences.
    phone0 = jax.random.randint(k_p0, (5,), 2, C, dtype=jnp.int32)
    phone1 = jax.random.randint(k_p1, (7,), 2, C, dtype=jnp.int32)
    batch = [{"phone": np.asarray(phone0)}, {"phone": np.asarray(phone1)}]
    info = {"logits": logits, "targets": batch}

    module = PERModule(input_key="logits", target_key="targets", blank_idx=0)
    average_per = module.forward(info)
    assert isinstance(average_per, float) and average_per >= 0.0

    print("KERNEL_OK")
</pallas_src>

<mosaic_0001>
module attributes {stable_mosaic.version = 11 : i64} {
  func.func @_argmax_kernel(%arg0: i32, %arg1: memref<16x32xf32, #tpu.memory_space<vmem>>, %arg2: memref<16x1xi32, #tpu.memory_space<vmem>>) attributes {dimension_semantics = [#tpu.dimension_semantics<parallel>], iteration_bounds = array<i64: 1>, scalar_prefetch = 0 : i64, scratch_operands = 0 : i64, tpu.core_type = #tpu.core_type<tc>, window_params = [{transform_indices = @transform_0, window_bounds = array<i64: 16, 32>}, {transform_indices = @transform_1, window_bounds = array<i64: 16, 1>}]} {
    %c0 = arith.constant 0 : index
    %c0_0 = arith.constant 0 : index
    %0 = vector.load %arg1[%c0, %c0_0] : memref<16x32xf32, #tpu.memory_space<vmem>>, vector<16x32xf32>
    %cst = arith.constant dense<0xFF800000> : vector<16xf32>
    %1 = vector.multi_reduction <maximumf>, %0, %cst [1] : vector<16x32xf32> to vector<16xf32>
    %2 = vector.shape_cast %1 : vector<16xf32> to vector<16x1xf32>
    %3 = tpu.iota {dimensions = array<i32: 1>} : vector<16x32xi32>
    %4 = vector.broadcast %2 : vector<16x1xf32> to vector<16x32xf32>
    %5 = arith.cmpf oge, %0, %4 : vector<16x32xf32>
    %c32_i32 = arith.constant 32 : i32
    %6 = vector.broadcast %c32_i32 : i32 to vector<16x32xi32>
    %7 = arith.select %5, %3, %6 : vector<16x32xi1>, vector<16x32xi32>
    %cst_1 = arith.constant dense<2147483647> : vector<16xi32>
    %8 = vector.multi_reduction <minsi>, %7, %cst_1 [1] : vector<16x32xi32> to vector<16xi32>
    %9 = vector.shape_cast %8 : vector<16xi32> to vector<16x1xi32>
    %c0_2 = arith.constant 0 : index
    %c0_3 = arith.constant 0 : index
    %10 = vector.load %arg2[%c0_2, %c0_3] : memref<16x1xi32, #tpu.memory_space<vmem>>, vector<16x1xi32>
    tpu.vector_store %arg2[%c0_2, %c0_3], %9 {strides = array<i32>} : memref<16x1xi32, #tpu.memory_space<vmem>>, vector<16x1xi32>,
    return
  }
  func.func @transform_0(%arg0: i32) -> (i32, i32) {
    %c0_i32 = arith.constant 0 : i32
    %c0_i32_0 = arith.constant 0 : i32
    return %arg0, %c0_i32 : i32, i32
  }
  func.func @transform_1(%arg0: i32) -> (i32, i32) {
    %c0_i32 = arith.constant 0 : i32
    %c0_i32_0 = arith.constant 0 : i32
    return %arg0, %c0_i32 : i32, i32
  }
}

</mosaic_0001>

<llo_original>
// kernel: tpu_custom_call.1
$region0: #{tpu_custom_call.1}
  #allocation0 [shape = 'u32[]', space=smem, size = 0x4, offset = 0x4, fixed_abs, tag = 'smem constant byte address 0x4 - core index']
  #allocation1 [shape = 'u32[144,128]{1,0:T(1,128)}', space=vmem, size = 0x12000, scoped, tag = 'internal scratch']
  %s0 = inlined_call_operand.hbm [shape: f32[16,32], index: 0, kind: input, shape index: {}]
  %s1 = inlined_call_operand.vmem [shape: s32[16,1], index: 1, kind: output, shape index: {}]
  %s2 = sld [smem:[#allocation0]]
  $region18: #{tpu_custom_call.1} parent=0
    _
  %s4 = ssub.s32 1, %s2
  %s5 = scalar_select 0, %s4, %s2
  $region1: #{tpu_custom_call.1} parent=0
    #allocation2 [shape = 'u8[8192]{0}', space=vmem, size = 0x2000, scoped, tag = 'input window, operand 0, single buffered']
    #allocation3 [shape = 's32[1]{0}', space=sflag, size = 0x4, scoped, tag = 'scoped memory for tpu_custom_call.1']
    %6 = vsyncpa [#allocation3], 0
    // Predicated region
    $region2: #{tpu_custom_call.1} parent=1 // pred_check
      _
    $region3: #{tpu_custom_call.1} parent=1 // pred_check_branch
      %8 = sbr.rel (0) target = $region5
    $region4: #{tpu_custom_call.1} parent=1 // pred_region
      %s10 = ssub.s32 256, 256
      %11 = vsyncadd [#allocation3], %s10
      %s12 = sshll.u32 [#allocation2], 4
      %s13 = int_to_ptr.vmem [resolvable:$true] %s12
      %18 = dma.hbm_to_vmem [thread:$0]  %s0, 256, %s13, [#allocation3], 128, 128, 8
    $region5: #{tpu_custom_call.1} parent=1 // pred_fallthru
      _
    // Predicated region
    $region6: #{tpu_custom_call.1} parent=1 // pred_check
      _
    $region7: #{tpu_custom_call.1} parent=1 // pred_check_branch
      %20 = sbr.rel (0) target = $region9
    $region8: #{tpu_custom_call.1} parent=1 // pred_region
      %21 = dma.done [#allocation3], 256
    $region9: #{tpu_custom_call.1} parent=1 // pred_fallthru
      _
    %v22 = vld [vmem:[#allocation2] sm:$0xff]
    %v23 = vld [vmem:[#allocation2 + $0x8] sm:$0xff]
    %vm24 = vcmask 261120
    %v25 = vsel %vm24, %v22, -inf
    %26 = vmax.xlane.f32.xlu0 %v25
    %v27 = vpop.xlane.xlu0 %26
    %v28 = vsel %vm24, %v23, -inf
    %29 = vmax.xlane.f32.xlu0 %v28
    %v30 = vpop.xlane.xlu0 %29
    %v31 = vlaneseq
    %v32 = vand.u32 %v31, 127
    %vm33 = vcmp.ge.f32.partialorder %v22, %v27
    %vm34 = vcmp.ge.f32.partialorder %v23, %v30
    %v35 = vsel %vm33, %v32, 32
    %v36 = vsel %vm34, %v32, 32
    %v37 = vsel %vm24, %v35, 2147483647
    %v38 = vand.u32 %v37, 65535
    %v39 = vshra.s32 %v37, 16
    %v40 = vcvt.s32.f32 %v38
    %v41 = vcvt.s32.f32 %v39
    %42 = vmin.xlane.f32.xlu0 %v41
    %v43 = vpop.xlane.xlu0 %42
    %vm44 = vcmp.eq.f32.partialorder %v41, %v43
    %v45 = vsel %vm44, %v40, inf
    %46 = vmin.xlane.f32.xlu0 %v45
    %v47 = vpop.xlane.xlu0 %46
    %v48 = vcvt.f32.s32 %v47
    %v49 = vcvt.f32.s32 %v43
    %v50 = vshll.u32 %v49, 16
    %v51 = vadd.s32 %v50, %v48
    %v52 = vsel %vm24, %v36, 2147483647
    %v53 = vand.u32 %v52, 65535
    %v54 = vshra.s32 %v52, 16
    %v55 = vcvt.s32.f32 %v53
    %v56 = vcvt.s32.f32 %v54
    %57 = vmin.xlane.f32.xlu0 %v56
    %v58 = vpop.xlane.xlu0 %57
    %vm59 = vcmp.eq.f32.partialorder %v56, %v58
    %v60 = vsel %vm59, %v55, inf
    %61 = vmin.xlane.f32.xlu0 %v60
    %v62 = vpop.xlane.xlu0 %61
    %v63 = vcvt.f32.s32 %v62
    %v64 = vcvt.f32.s32 %v58
    %v65 = vshll.u32 %v64, 16
    %v66 = vadd.s32 %v65, %v63
    %vm67 = vcmask 7168
    %68 = vst.msk [vmem:[%s1] sm:$0xff] %vm67, %v51
    %69 = vst.msk [vmem:[%s1 + $0x8] sm:$0xff] %vm67, %v66
    // Predicated region
    $region10: #{tpu_custom_call.1} parent=1 // pred_check
      _
    $region11: #{tpu_custom_call.1} parent=1 // pred_check_branch
      %71 = sbr.rel (0) target = $region13
    $region12: #{tpu_custom_call.1} parent=1 // pred_region
      _
    $region13: #{tpu_custom_call.1} parent=1 // pred_fallthru
      _
    // Predicated region
    $region14: #{tpu_custom_call.1} parent=1 // pred_check
      _
    $region15: #{tpu_custom_call.1} parent=1 // pred_check_branch
      %73 = sbr.rel (0) target = $region17
    $region16: #{tpu_custom_call.1} parent=1 // pred_region
      _
    $region17: #{tpu_custom_call.1} parent=1 // pred_fallthru
      _
    %74 = vsyncpa [#allocation3], 1

</llo_original>
